<compile_context>
chip_gen: v7x
topology: tpu7x:2x2x1
jax: 0.10.0
libtpu: 0.0.40
codegen_flags: <defaults>
</compile_context>

<pallas_src>
import jax
import jax.numpy as jnp
import numpy as np
from jax.experimental import pallas as pl
from jax.experimental.pallas import tpu as pltpu


# --------------------------------------------------------------------------- #
# kernel 1: projection + per-tile partial sum of the attention logits
# --------------------------------------------------------------------------- #
def _score_partial_kernel(z_ref, w1t_ref, b1_ref, w2_ref, p_ref):
    # z_ref  : (tm, D)  rows are node-major / metapath-minor (bf16 or f32)
    # w1t_ref: (D, H)   first Linear weight, transposed (same dtype as z)
    # b1_ref : (1, H)   first Linear bias (f32)
    # w2_ref : (1, H)   second Linear weight, no bias (f32)
    # p_ref  : (8, M)   f32 partial sum of scores over this tile's nodes
    tm = z_ref.shape[0]
    M = p_ref.shape[-1]

    # (tm, D) @ (D, H) on the MXU, f32 accumulate.
    h = jnp.tanh(
        jnp.dot(z_ref[...], w1t_ref[...], preferred_element_type=jnp.float32)
        + b1_ref[...]
    )
    # Second Linear has a single output column: VPU multiply + lane reduce
    # instead of a 1/128-wide MXU matmul.
    s = jnp.sum(h * w2_ref[...], axis=-1, keepdims=True)          # (tm, 1) f32

    # Row r of the flattened z belongs to metapath (r % M).  Reduce scores over
    # the nodes of this tile, separately per metapath (tiny (8, M) writeback).
    row_mp = jax.lax.broadcasted_iota(jnp.int32, (tm, M), 0) % M
    col = jax.lax.broadcasted_iota(jnp.int32, (tm, M), 1)
    masked = jnp.where(row_mp == col, s, 0.0)                      # (tm, M)
    partial = jnp.sum(masked, axis=0, keepdims=True)               # (1, M)
    p_ref[...] = jnp.broadcast_to(partial, p_ref.shape)


# --------------------------------------------------------------------------- #
# kernel 2: beta-weighted reduction over the metapath axis
# --------------------------------------------------------------------------- #
def _weighted_sum_kernel(beta_ref, z_ref, o_ref):
    # beta_ref: (M,) f32 in SMEM (scalar reads)
    # z_ref   : (tn, M, D) bf16 or f32
    # o_ref   : (tn, D)    f32
    M = z_ref.shape[1]
    # Unrolled static loop of M scalar*vector FMAs on the VPU (M is a small
    # compile-time constant); avoids a half-empty sublane reduce over axis=1.
    acc = beta_ref[0] * z_ref[:, 0, :].astype(jnp.float32)
    for m in range(1, M):
        acc = acc + beta_ref[m] * z_ref[:, m, :].astype(jnp.float32)
    o_ref[...] = acc.astype(o_ref.dtype)


# --------------------------------------------------------------------------- #
# wrapper
# --------------------------------------------------------------------------- #
def _pick_node_tile(n_nodes, m, d, itemsize, target_bytes):
    """Largest node-row tile whose (tn, M, D) block is <= target_bytes, divides
    N, and keeps the flattened sublane dim a multiple of 8 (or is the full N)."""
    cap = max(1, min(n_nodes, target_bytes // max(1, m * d * itemsize)))
    for tn in range(cap, 0, -1):
        if n_nodes % tn == 0 and (tn % 8 == 0 or tn == n_nodes):
            return tn
    return n_nodes


def semantic_attention(z, w1, b1, w2, *, tn_score=None, tn_combine=None,
                       use_bf16=True, block_target_bytes=4 << 20):
    """z: (N, M, D) f32; w1: (H, D); b1: (H,); w2: (1, H)  -> (N, D) f32."""
    N, M, D = z.shape
    H = w1.shape[0]

    compute_dtype = jnp.bfloat16 if use_bf16 else jnp.float32
    itemsize = jnp.dtype(compute_dtype).itemsize

    # Tiles sized so a double-buffered z block stays well inside every chip's
    # default scoped-VMEM limit (v5e 16 MiB .. v7x 64 MiB physical).
    # TODO(synk): mask the tail tile to support N not divisible by the node tile.
    if tn_score is None:
        tn_score = _pick_node_tile(N, M, D, itemsize, block_target_bytes)
    if tn_combine is None:
        tn_combine = _pick_node_tile(N, M, D, itemsize, block_target_bytes)
    assert N % tn_score == 0 and N % tn_combine == 0
    tm = tn_score * M                       # flattened rows of z per grid step
    assert tm % 8 == 0 or tm == N * M
    assert tn_combine % 8 == 0 or tn_combine == N

    zc = z.astype(compute_dtype)            # bf16 halves HBM reads of both passes
    z2d = zc.reshape(N * M, D)
    w1t = w1.astype(compute_dtype).T        # (D, H)
    b1r = b1.reshape(1, H).astype(jnp.float32)
    w2r = w2.reshape(1, H).astype(jnp.float32)

    n_tiles1 = N // tn_score
    n_tiles2 = N // tn_combine

    # --- kernel 1: projections + partial mean over nodes ---------------------
    cost1 = pl.CostEstimate(
        flops=2 * N * M * D * H + 2 * N * M * H,
        transcendentals=N * M * H,
        bytes_accessed=N * M * D * itemsize + D * H * itemsize + 2 * H * 4
        + n_tiles1 * 8 * M * 4,
    )
    partials = pl.pallas_call(
        _score_partial_kernel,
        out_shape=jax.ShapeDtypeStruct((n_tiles1 * 8, M), jnp.float32),
        grid_spec=pltpu.PrefetchScalarGridSpec(
            num_scalar_prefetch=0,
            grid=(n_tiles1,),
            in_specs=[
                pl.BlockSpec((tm, D), lambda i: (i, 0)),
                pl.BlockSpec((D, H), lambda i: (0, 0)),
                pl.BlockSpec((1, H), lambda i: (0, 0)),
                pl.BlockSpec((1, H), lambda i: (0, 0)),
            ],
            out_specs=pl.BlockSpec((8, M), lambda i: (i, 0)),
        ),
        compiler_params=pltpu.CompilerParams(
            dimension_semantics=("parallel",)),
        cost_estimate=cost1,
    )(z2d, w1t, b1r, w2r)

    # Tiny (M,)-sized glue in XLA: finish the mean over nodes + softmax.
    w_mean = partials.reshape(n_tiles1, 8, M)[:, 0, :].sum(axis=0) / N   # (M,)
    beta = jax.nn.softmax(w_mean, axis=0).astype(jnp.float32)            # (M,)

    # --- kernel 2: beta-weighted reduction over the metapath axis ------------
    cost2 = pl.CostEstimate(
        flops=2 * N * M * D,
        transcendentals=0,
        bytes_accessed=N * M * D * itemsize + N * D * 4 + M * 4,
    )
    out = pl.pallas_call(
        _weighted_sum_kernel,
        out_shape=jax.ShapeDtypeStruct((N, D), jnp.float32),
        grid_spec=pltpu.PrefetchScalarGridSpec(
            num_scalar_prefetch=0,
            grid=(n_tiles2,),
            in_specs=[
                pl.BlockSpec(memory_space=pltpu.MemorySpace.SMEM),   # beta (M,)
                pl.BlockSpec((tn_combine, M, D), lambda i: (i, 0, 0)),
            ],
            out_specs=pl.BlockSpec((tn_combine, D), lambda i: (i, 0)),
        ),
        compiler_params=pltpu.CompilerParams(
            dimension_semantics=("parallel",)),
        cost_estimate=cost2,
    )(beta, zc)
    return out


def semantic_attention_ref(z, w1, b1, w2):
    h = jnp.tanh(jnp.einsum('nmd,hd->nmh', z, w1) + b1)           # (N, M, H)
    w = jnp.einsum('nmh,oh->nmo', h, w2)                           # (N, M, 1)
    wbar = w.mean(0)                                               # (M, 1)
    beta = jax.nn.softmax(wbar, axis=0)                            # (M, 1)
    beta = jnp.broadcast_to(beta, (z.shape[0],) + beta.shape)      # (N, M, 1)
    return (beta * z).sum(1)                                       # (N, D)


if __name__ == "__main__":
    N, M, D, H = 16, 4, 32, 32     # nodes, metapaths, in_size, hidden_size
    key = jax.random.PRNGKey(0)
    kz, k1, kb, k2 = jax.random.split(key, 4)

    z = jax.random.normal(kz, (N, M, D), dtype=jnp.float32)

    # Deterministic PyTorch-style Linear init (uniform +-1/sqrt(fan_in)).
    bound1 = 1.0 / np.sqrt(D)
    w1 = jax.random.uniform(k1, (H, D), minval=-bound1, maxval=bound1, dtype=jnp.float32)
    b1 = jax.random.uniform(kb, (H,), minval=-bound1, maxval=bound1, dtype=jnp.float32)
    bound2 = 1.0 / np.sqrt(H)
    w2 = jax.random.uniform(k2, (1, H), minval=-bound2, maxval=bound2, dtype=jnp.float32)

    ref = semantic_attention_ref(z, w1, b1, w2)

    # f32 path with a multi-step grid (2 node tiles per kernel): strict check.
    out_f32 = jax.block_until_ready(
        semantic_attention(z, w1, b1, w2, tn_score=8, tn_combine=8, use_bf16=False))
    np.testing.assert_allclose(np.asarray(out_f32), np.asarray(ref),
                               rtol=1e-4, atol=1e-4)

    # bf16-input fast path (halved HBM traffic, f32 accumulation): looser check.
    out_bf16 = jax.block_until_ready(
        semantic_attention(z, w1, b1, w2, tn_score=8, tn_combine=8, use_bf16=True))
    np.testing.assert_allclose(np.asarray(out_bf16), np.asarray(ref),
                               rtol=2e-2, atol=2e-2)

    print("KERNEL_OK")
</pallas_src>

<mosaic_0001>
module attributes {stable_mosaic.version = 11 : i64} {
  func.func @_score_partial_kernel(%arg0: i32, %arg1: memref<32x32xf32, #tpu.memory_space<vmem>>, %arg2: memref<32x32xf32, #tpu.memory_space<vmem>>, %arg3: memref<1x32xf32, #tpu.memory_space<vmem>>, %arg4: memref<1x32xf32, #tpu.memory_space<vmem>>, %arg5: memref<8x4xf32, #tpu.memory_space<vmem>>) attributes {dimension_semantics = [#tpu.dimension_semantics<parallel>], iteration_bounds = array<i64: 2>, scalar_prefetch = 0 : i64, scratch_operands = 0 : i64, tpu.core_type = #tpu.core_type<tc>, window_params = [{transform_indices = @transform_0, window_bounds = array<i64: 32, 32>}, {pipeline_mode = #tpu.pipeline_mode<synchronous>, transform_indices = @transform_1, window_bounds = array<i64: 32, 32>}, {pipeline_mode = #tpu.pipeline_mode<synchronous>, transform_indices = @transform_2, window_bounds = array<i64: 1, 32>}, {pipeline_mode = #tpu.pipeline_mode<synchronous>, transform_indices = @transform_3, window_bounds = array<i64: 1, 32>}, {transform_indices = @transform_4, window_bounds = array<i64: 8, 4>}]} {
    %c0 = arith.constant 0 : index
    %c0_0 = arith.constant 0 : index
    %0 = vector.load %arg1[%c0, %c0_0] : memref<32x32xf32, #tpu.memory_space<vmem>>, vector<32x32xf32>
    %c0_1 = arith.constant 0 : index
    %c0_2 = arith.constant 0 : index
    %1 = vector.load %arg2[%c0_1, %c0_2] : memref<32x32xf32, #tpu.memory_space<vmem>>, vector<32x32xf32>
    %cst = arith.constant dense<0.000000e+00> : vector<32x32xf32>
    %2 = tpu.matmul %0, %1, %cst {dimension_numbers = #tpu.dot_dimension_numbers<[1], [0], [0], [1], [0, 0, 1, 1], [], []>} : vector<32x32xf32>, vector<32x32xf32>, vector<32x32xf32> -> vector<32x32xf32>
    %c0_3 = arith.constant 0 : index
    %c0_4 = arith.constant 0 : index
    %3 = vector.load %arg3[%c0_3, %c0_4] : memref<1x32xf32, #tpu.memory_space<vmem>>, vector<1x32xf32>
    %4 = vector.broadcast %3 : vector<1x32xf32> to vector<32x32xf32>
    %5 = arith.addf %2, %4 : vector<32x32xf32>
    %6 = math.tanh %5 : vector<32x32xf32>
    %c0_5 = arith.constant 0 : index
    %c0_6 = arith.constant 0 : index
    %7 = vector.load %arg4[%c0_5, %c0_6] : memref<1x32xf32, #tpu.memory_space<vmem>>, vector<1x32xf32>
    %8 = vector.broadcast %7 : vector<1x32xf32> to vector<32x32xf32>
    %9 = arith.mulf %6, %8 : vector<32x32xf32>
    %cst_7 = arith.constant dense<0.000000e+00> : vector<32xf32>
    %10 = vector.multi_reduction <add>, %9, %cst_7 [1] : vector<32x32xf32> to vector<32xf32>
    %11 = vector.shape_cast %10 : vector<32xf32> to vector<32x1xf32>
    %12 = tpu.iota {dimensions = array<i32: 0>} : vector<32x4xi32>
    %c4_i32 = arith.constant 4 : i32
    %c0_i32 = arith.constant 0 : i32
    %13 = arith.cmpi eq, %c4_i32, %c0_i32 : i32
    %c1_i32 = arith.constant 1 : i32
    %14 = arith.select %13, %c1_i32, %c4_i32 : i32
    %15 = vector.broadcast %14 : i32 to vector<32x4xi32>
    %16 = arith.remsi %12, %15 : vector<32x4xi32>
    %c0_i32_8 = arith.constant 0 : i32
    %17 = vector.broadcast %c0_i32_8 : i32 to vector<32x4xi32>
    %18 = arith.cmpi ne, %16, %17 : vector<32x4xi32>
    %c0_i32_9 = arith.constant 0 : i32
    %19 = vector.broadcast %c0_i32_9 : i32 to vector<32x4xi32>
    %20 = arith.cmpi slt, %16, %19 : vector<32x4xi32>
    %c0_i32_10 = arith.constant 0 : i32
    %21 = arith.cmpi slt, %14, %c0_i32_10 : i32
    %22 = vector.broadcast %21 : i1 to vector<32x4xi1>
    %23 = vector.broadcast %22 : vector<32x4xi1> to vector<32x4xi1>
    %24 = arith.xori %20, %23 : vector<32x4xi1>
    %25 = arith.andi %24, %18 : vector<32x4xi1>
    %26 = vector.broadcast %14 : i32 to vector<32x4xi32>
    %27 = arith.addi %16, %26 : vector<32x4xi32>
    %28 = arith.select %25, %27, %16 : vector<32x4xi1>, vector<32x4xi32>
    %29 = tpu.iota {dimensions = array<i32: 1>} : vector<32x4xi32>
    %30 = arith.cmpi eq, %28, %29 : vector<32x4xi32>
    %cst_11 = arith.constant 0.000000e+00 : f32
    %31 = vector.shape_cast %11 : vector<32x1xf32> to vector<32x1xf32>
    %32 = vector.broadcast %31 : vector<32x1xf32> to vector<32x4xf32>
    %33 = vector.broadcast %cst_11 : f32 to vector<32x4xf32>
    %34 = arith.select %30, %32, %33 : vector<32x4xi1>, vector<32x4xf32>
    %cst_12 = arith.constant dense<0.000000e+00> : vector<4xf32>
    %35 = vector.multi_reduction <add>, %34, %cst_12 [0] : vector<32x4xf32> to vector<4xf32>
    %36 = vector.shape_cast %35 : vector<4xf32> to vector<1x4xf32>
    %37 = vector.shape_cast %36 : vector<1x4xf32> to vector<1x4xf32>
    %38 = vector.broadcast %37 : vector<1x4xf32> to vector<8x4xf32>
    %c0_13 = arith.constant 0 : index
    %c0_14 = arith.constant 0 : index
    %39 = vector.load %arg5[%c0_13, %c0_14] : memref<8x4xf32, #tpu.memory_space<vmem>>, vector<8x4xf32>
    tpu.vector_store %arg5[%c0_13, %c0_14], %38 {strides = array<i32>} : memref<8x4xf32, #tpu.memory_space<vmem>>, vector<8x4xf32>,
    return
  }
  func.func @transform_0(%arg0: i32) -> (i32, i32) {
    %c0_i32 = arith.constant 0 : i32
    %c0_i32_0 = arith.constant 0 : i32
    return %arg0, %c0_i32 : i32, i32
  }
  func.func @transform_1(%arg0: i32) -> (i32, i32) {
    %c0_i32 = arith.constant 0 : i32
    %c0_i32_0 = arith.constant 0 : i32
    %c0_i32_1 = arith.constant 0 : i32
    return %c0_i32, %c0_i32_0 : i32, i32
  }
  func.func @transform_2(%arg0: i32) -> (i32, i32) {
    %c0_i32 = arith.constant 0 : i32
    %c0_i32_0 = arith.constant 0 : i32
    %c0_i32_1 = arith.constant 0 : i32
    return %c0_i32, %c0_i32_0 : i32, i32
  }
  func.func @transform_3(%arg0: i32) -> (i32, i32) {
    %c0_i32 = arith.constant 0 : i32
    %c0_i32_0 = arith.constant 0 : i32
    %c0_i32_1 = arith.constant 0 : i32
    return %c0_i32, %c0_i32_0 : i32, i32
  }
  func.func @transform_4(%arg0: i32) -> (i32, i32) {
    %c0_i32 = arith.constant 0 : i32
    %c0_i32_0 = arith.constant 0 : i32
    return %arg0, %c0_i32 : i32, i32
  }
}

</mosaic_0001>

<llo_original>
// kernel: tpu_custom_call.1
$region0: #{tpu_custom_call.1}
  #allocation0 [shape = 'u32[]', space=smem, size = 0x4, offset = 0x4, fixed_abs, tag = 'smem constant byte address 0x4 - core index']
  #allocation1 [shape = 'u32[144,128]{1,0:T(1,128)}', space=vmem, size = 0x12000, scoped, tag = 'internal scratch']
  %s0 = inlined_call_operand.vmem [shape: f32[64,32], index: 0, kind: input, shape index: {}]
  %s1 = inlined_call_operand.vmem [shape: f32[32,32], index: 1, kind: input, shape index: {}]
  %s2 = inlined_call_operand.vmem [shape: f32[1,32], index: 2, kind: input, shape index: {}]
  %s3 = inlined_call_operand.vmem [shape: f32[1,32], index: 3, kind: input, shape index: {}]
  %s4 = inlined_call_operand.vmem [shape: f32[16,4], index: 4, kind: output, shape index: {}]
  %s5 = sld [smem:[#allocation0]]
  $region49: #{tpu_custom_call.1} parent=0
    _
  %s7 = ssub.s32 1, %s5
  %s8 = scalar_select 0, %s7, %s5
  loop: start=0, step=1, limit=4
  $region2: #{tpu_custom_call.1} parent=0 // loop_pre_header
    _
  $region3: #{tpu_custom_call.1} parent=0 // loop_header
    %s10 = sphi 0, %s14
    %p11 = scmp.ge.s32.totalorder %s10, 4
    %s20 = sphi 0, %s22
    %s23 = sphi 0, %s20
    %s24 = sphi 0, %s23
    %s40 = sphi 0, %s24
    %s44 = sphi 0, %s44
    %s46 = sphi 0, %s44
    %s47 = sphi 0, %s46
    %s61 = sphi 0, %s47
    %s65 = sphi 0, %s65
    %s67 = sphi 0, %s65
    %s68 = sphi 0, %s67
    %s82 = sphi 0, %s68
    %s86 = sphi 0, %s86
    %s88 = sphi 0, %s86
    %s89 = sphi 0, %s88
    %s103 = sphi 0, %s89
    %s109 = sphi 0, %s111
    %s112 = sphi 0, %s109
    %s113 = sphi 0, %s112
    %s129 = sphi 0, %s113
  $region4: #{tpu_custom_call.1} parent=0 // loop_header_branch
    %13 = sbr.rel (%p11) target = $region8
  $region5: #{tpu_custom_call.1} parent=0 // loop_body
    %s15 = ssub.s32 %s10, 1
    %s16 = ssub.s32 %s10, 2
    %s17 = sadd.s32 %s10, 1
    %s18 = ssub.s32 %s10, %s17
    %p19 = scmp.eq.s32.totalorder %s18, 0
    %s21 = sadd.s32 %s20, 1
    %s22 = scalar_select %p19, %s20, %s21
    %p25 = pneg %p19
    %p26 = scmp.eq.s32.totalorder %s10, 1
    %p27 = por %p25, %p26
    %p28 = scmp.ne.s32.totalorder %s20, %s23
    %p29 = scmp.eq.s32.totalorder %s10, 0
    %p30 = por %p28, %p29
    %p31 = scmp.ne.s32.totalorder %s20, %s23
    %p32 = scmp.eq.s32.totalorder %s15, 1
    %p33 = por %p31, %p32
    %p34 = scmp.ne.s32.totalorder %s23, %s24
    %p35 = scmp.eq.s32.totalorder %s15, 0
    %p36 = por %p34, %p35
    %p37 = scmp.ne.s32.totalorder %s23, %s24
    %p38 = scmp.eq.s32.totalorder %s16, 1
    %p39 = por %p37, %p38
    %p41 = scmp.ne.s32.totalorder %s24, %s40
    %p42 = scmp.eq.s32.totalorder %s16, 0
    %p43 = por %p41, %p42
    %s45 = sadd.s32 %s44, 1
    %p48 = scmp.eq.s32.totalorder %s10, 1
    %p49 = scmp.ne.s32.totalorder %s44, %s46
    %p50 = scmp.eq.s32.totalorder %s10, 0
    %p51 = por %p49, %p50
    %p52 = scmp.ne.s32.totalorder %s44, %s46
    %p53 = scmp.eq.s32.totalorder %s15, 1
    %p54 = por %p52, %p53
    %p55 = scmp.ne.s32.totalorder %s46, %s47
    %p56 = scmp.eq.s32.totalorder %s15, 0
    %p57 = por %p55, %p56
    %p58 = scmp.ne.s32.totalorder %s46, %s47
    %p59 = scmp.eq.s32.totalorder %s16, 1
    %p60 = por %p58, %p59
    %p62 = scmp.ne.s32.totalorder %s47, %s61
    %p63 = scmp.eq.s32.totalorder %s16, 0
    %p64 = por %p62, %p63
    %s66 = sadd.s32 %s65, 1
    %p69 = scmp.eq.s32.totalorder %s10, 1
    %p70 = scmp.ne.s32.totalorder %s65, %s67
    %p71 = scmp.eq.s32.totalorder %s10, 0
    %p72 = por %p70, %p71
    %p73 = scmp.ne.s32.totalorder %s65, %s67
    %p74 = scmp.eq.s32.totalorder %s15, 1
    %p75 = por %p73, %p74
    %p76 = scmp.ne.s32.totalorder %s67, %s68
    %p77 = scmp.eq.s32.totalorder %s15, 0
    %p78 = por %p76, %p77
    %p79 = scmp.ne.s32.totalorder %s67, %s68
    %p80 = scmp.eq.s32.totalorder %s16, 1
    %p81 = por %p79, %p80
    %p83 = scmp.ne.s32.totalorder %s68, %s82
    %p84 = scmp.eq.s32.totalorder %s16, 0
    %p85 = por %p83, %p84
    %s87 = sadd.s32 %s86, 1
    %p90 = scmp.eq.s32.totalorder %s10, 1
    %p91 = scmp.ne.s32.totalorder %s86, %s88
    %p92 = scmp.eq.s32.totalorder %s10, 0
    %p93 = por %p91, %p92
    %p94 = scmp.ne.s32.totalorder %s86, %s88
    %p95 = scmp.eq.s32.totalorder %s15, 1
    %p96 = por %p94, %p95
    %p97 = scmp.ne.s32.totalorder %s88, %s89
    %p98 = scmp.eq.s32.totalorder %s15, 0
    %p99 = por %p97, %p98
    %p100 = scmp.ne.s32.totalorder %s88, %s89
    %p101 = scmp.eq.s32.totalorder %s16, 1
    %p102 = por %p100, %p101
    %p104 = scmp.ne.s32.totalorder %s89, %s103
    %p105 = scmp.eq.s32.totalorder %s16, 0
    %p106 = por %p104, %p105
    %s107 = ssub.s32 %s10, %s17
    %p108 = scmp.eq.s32.totalorder %s107, 0
    %s110 = sadd.s32 %s109, 1
    %s111 = scalar_select %p108, %s109, %s110
    %p114 = pneg %p108
    %p115 = scmp.eq.s32.totalorder %s10, 1
    %p116 = por %p114, %p115
    %p117 = scmp.ne.s32.totalorder %s109, %s112
    %p118 = scmp.eq.s32.totalorder %s10, 0
    %p119 = por %p117, %p118
    %p120 = scmp.ne.s32.totalorder %s109, %s112
    %p121 = scmp.eq.s32.totalorder %s15, 1
    %p122 = por %p120, %p121
    %p123 = scmp.ne.s32.totalorder %s112, %s113
    %p124 = scmp.eq.s32.totalorder %s15, 0
    %p125 = por %p123, %p124
    %p126 = scmp.ne.s32.totalorder %s112, %s113
    %p127 = scmp.eq.s32.totalorder %s16, 1
    %p128 = por %p126, %p127
    %p130 = scmp.ne.s32.totalorder %s113, %s129
    %p131 = scmp.eq.s32.totalorder %s16, 0
    %p132 = por %p130, %p131
    %p133 = scmp.le.s32.totalorder 1, %s10
    %p134 = scmp.lt.s32.totalorder %s10, 3
    %p135 = pnand %p133, %p134
    %p136 = pneg %p135
    // Predicated region
    $region9: #{tpu_custom_call.1} parent=5 // pred_check
      _
    $region10: #{tpu_custom_call.1} parent=5 // pred_check_branch
      %138 = sbr.rel (%p135) target = $region12
    $region11: #{tpu_custom_call.1} parent=5 // pred_region
      %s139 = ssub.s32 %s10, 1
      // Predicated region
      $region13: #{tpu_custom_call.1} parent=11 // pred_check
        %p140 = pneg %p57
      $region14: #{tpu_custom_call.1} parent=11 // pred_check_branch
        %142 = sbr.rel (%p140) target = $region16
      $region15: #{tpu_custom_call.1} parent=11 // pred_region
        _
      $region16: #{tpu_custom_call.1} parent=11 // pred_fallthru
        _
      // Predicated region
      $region17: #{tpu_custom_call.1} parent=11 // pred_check
        %p143 = pneg %p78
      $region18: #{tpu_custom_call.1} parent=11 // pred_check_branch
        %145 = sbr.rel (%p143) target = $region20
      $region19: #{tpu_custom_call.1} parent=11 // pred_region
        _
      $region20: #{tpu_custom_call.1} parent=11 // pred_fallthru
        _
      // Predicated region
      $region21: #{tpu_custom_call.1} parent=11 // pred_check
        %p146 = pneg %p99
      $region22: #{tpu_custom_call.1} parent=11 // pred_check_branch
        %148 = sbr.rel (%p146) target = $region24
      $region23: #{tpu_custom_call.1} parent=11 // pred_region
        _
      $region24: #{tpu_custom_call.1} parent=11 // pred_fallthru
        _
    $region12: #{tpu_custom_call.1} parent=5 // pred_fallthru
      _
    %p149 = scmp.lt.s32.totalorder %s10, 2
    // Predicated region
    $region25: #{tpu_custom_call.1} parent=5 // pred_check
      %p150 = pneg %p149
    $region26: #{tpu_custom_call.1} parent=5 // pred_check_branch
      %152 = sbr.rel (%p150) target = $region28
    $region27: #{tpu_custom_call.1} parent=5 // pred_region
      // Predicated region
      $region29: #{tpu_custom_call.1} parent=27 // pred_check
        %p153 = pneg %p30
      $region30: #{tpu_custom_call.1} parent=27 // pred_check_branch
        %155 = sbr.rel (%p153) target = $region32
      $region31: #{tpu_custom_call.1} parent=27 // pred_region
        %s156 = smul.u32 4, %s10
        %p157 = scmp.lt.s32.totalorder %s156, 7
        %s158 = scalar_select %p157, %s156, 7
        %s159 = smul.addr %s158, 8
        %s160 = scalar_lea.vmem %s0, %s159
        %s161 = smul.u32 4, %s10
      $region32: #{tpu_custom_call.1} parent=27 // pred_fallthru
        _
    $region28: #{tpu_custom_call.1} parent=5 // pred_fallthru
      _
    %p162 = scmp.le.s32.totalorder 1, %s10
    %p163 = scmp.lt.s32.totalorder %s10, 3
    %p164 = pnand %p162, %p163
    %p165 = pneg %p164
    // Predicated region
    $region33: #{tpu_custom_call.1} parent=5 // pred_check
      _
    $region34: #{tpu_custom_call.1} parent=5 // pred_check_branch
      %167 = sbr.rel (%p164) target = $region36
    $region35: #{tpu_custom_call.1} parent=5 // pred_region
      %s168 = ssub.s32 %s10, 1
      %s169 = smul.u32 4, %s15
      %p170 = scmp.lt.s32.totalorder %s169, 7
      %s171 = scalar_select %p170, %s169, 7
      %s172 = smul.addr %s171, 8
      %s173 = scalar_lea.vmem %s0, %s172
      %p174 = pneg %p36
      %p175 = pneg %p33
      %p176 = pneg %p57
      %p177 = pneg %p54
      %p178 = pneg %p78
      %p179 = pneg %p75
      %p180 = pneg %p99
      %p181 = pneg %p96
      %p182 = pneg %p125
      %p183 = pneg %p122
      %p184 = scmp.lt.s32.totalorder %s15, 1
      %s185 = scalar_select %p184, %s15, 1
      %s186 = smul.addr %s185, 8
      %s187 = scalar_lea.vmem %s4, %s186
      %s188 = smul.u32 4, %s15
      %p189 = scmp.lt.s32.totalorder %s188, 7
      %s190 = scalar_select %p189, %s188, 7
      %s191 = smul.addr %s190, 8
      %s192 = scalar_lea.vmem %s0, %s191
      %s193 = smul.u32 4, %s15
      %p194 = scmp.lt.s32.totalorder %s15, 1
      %s195 = scalar_select %p194, %s15, 1
      %s196 = smul.addr %s195, 8
      %s197 = scalar_lea.vmem %s4, %s196
      %v198 = vld [vmem:[%s192] sm:$0xff]
      %v199 = vld [vmem:[%s192 + $0x8] sm:$0xff]
      %v200 = vld [vmem:[%s192 + $0x10] sm:$0xff]
      %v201 = vld [vmem:[%s192 + $0x18] sm:$0xff]
      %v202 = vld [vmem:[%s1] sm:$0xff]
      %v203 = vld [vmem:[%s1 + $0x8] sm:$0xff]
      %v204 = vld [vmem:[%s1 + $0x10] sm:$0xff]
      %v205 = vld [vmem:[%s1 + $0x18] sm:$0xff]
      %v206 = vld [vmem:[%s2] sm:$0x1]
      %v208 = vlaneseq
      %v209 = vshrl.u32 %v208, 7
      %v210 = vsub.s32 0, %v209
      %v211 = vrot.slane %v206, %v210
      %vm213 = vcmask 261120
      %v215 = vsel %vm213, %v198, 0
      %v218 = vsel %vm213, %v199, 0
      %v221 = vsel %vm213, %v200, 0
      %v224 = vsel %vm213, %v201, 0
      %226 = vmatprep.subr.mxu0 0.0
      %227 = vmatpush1.msra.mxu0 %v202
      %228 = vmatprep.subr.mxu0 0.0
      %229 = vmatpush1.msra.mxu0 %v203
      %230 = vmatprep.subr.mxu0 0.0
      %231 = vmatpush1.msra.mxu0 %v204
      %232 = vmatprep.subr.mxu0 0.0
      %233 = vmatpush1.msra.mxu0 %v205
      %234 = vmatprep.subr.mxu0 0.0
      %235 = vmatpush1.msra.mxu0 0.0
      %236 = vmatprep.subr.mxu0 0.0
      %237 = vmatpush1.msra.mxu0 0.0
      %238 = vmatprep.subr.mxu0 0.0
      %239 = vmatpush1.msra.mxu0 0.0
      %240 = vmatprep.subr.mxu0 0.0
      %241 = vmatpush1.msra.mxu0 0.0
      %242 = vmatprep.subr.mxu0 0.0
      %243 = vmatpush1.msra.mxu0 0.0
      %244 = vmatprep.subr.mxu0 0.0
      %245 = vmatpush1.msra.mxu0 0.0
      %246 = vmatprep.subr.mxu0 0.0
      %247 = vmatpush1.msra.mxu0 0.0
      %248 = vmatprep.subr.mxu0 0.0
      %249 = vmatpush1.msra.mxu0 0.0
      %250 = vmatprep.subr.mxu0 0.0
      %251 = vmatpush1.msra.mxu0 0.0
      %252 = vmatprep.subr.mxu0 0.0
      %253 = vmatpush1.msra.mxu0 0.0
      %254 = vmatprep.subr.mxu0 0.0
      %255 = vmatpush1.msra.mxu0 0.0
      %256 = vmatprep.subr.mxu0 0.0
      %257 = vmatpush1.msra.mxu0 0.0
      %258 = vmatprep.subr.mxu0 0.0
      %259 = vmatpush1.msra.mxu0 0.0
      %260 = vmatprep.subr.mxu0 0.0
      %261 = vmatpush1.msra.mxu0 0.0
      %262 = vmatprep.subr.mxu0 0.0
      %263 = vmatpush1.msra.mxu0 0.0
      %264 = vmatprep.subr.mxu0 0.0
      %265 = vmatpush1.msra.mxu0 0.0
      %266 = vmatprep.subr.mxu0 0.0
      %267 = vmatpush1.msra.mxu0 0.0
      %268 = vmatprep.subr.mxu0 0.0
      %269 = vmatpush1.msra.mxu0 0.0
      %270 = vmatprep.subr.mxu0 0.0
      %271 = vmatpush1.msra.mxu0 0.0
      %272 = vmatprep.subr.mxu0 0.0
      %273 = vmatpush1.msra.mxu0 0.0
      %274 = vmatprep.subr.mxu0 0.0
      %275 = vmatpush1.msra.mxu0 0.0
      %276 = vmatprep.subr.mxu0 0.0
      %277 = vmatpush1.msra.mxu0 0.0
      %278 = vmatprep.subr.mxu0 0.0
      %279 = vmatpush1.msra.mxu0 0.0
      %280 = vmatprep.subr.mxu0 0.0
      %281 = vmatpush1.msra.mxu0 0.0
      %282 = vmatprep.subr.mxu0 0.0
      %283 = vmatpush1.msra.mxu0 0.0
      %284 = vmatprep.subr.mxu0 0.0
      %285 = vmatpush1.msra.mxu0 0.0
      %286 = vmatprep.subr.mxu0 0.0
      %287 = vmatpush1.msra.mxu0 0.0
      %288 = vmatprep.subr.mxu0 0.0
      %289 = vmatpush1.msra.mxu0 0.0
      %290 = vmatprep.mubr.f32.mxu0 0.0
      %291 = vmatmul.mubr.f32.gmra.mrb[0].mxu0 %v215
      %v292 = vpop.f32.mrb[0].mxu0
      %v293 = vadd.f32 %v211, %v292
      %v294 = vpop.f32.mrb[0].mxu0
      %295 = vmatprep.mubr.f32.mxu0 0.0
      %296 = vmatmul.mubr.f32.gmra.mrb[0].mxu0 %v218
      %v297 = vpop.f32.mrb[0].mxu0
      %v298 = vadd.f32 %v211, %v297
      %v299 = vpop.f32.mrb[0].mxu0
      %300 = vmatprep.mubr.f32.mxu0 0.0
      %301 = vmatmul.mubr.f32.gmra.mrb[0].mxu0 %v221
      %v302 = vpop.f32.mrb[0].mxu0
      %v303 = vadd.f32 %v211, %v302
      %v304 = vpop.f32.mrb[0].mxu0
      %305 = vmatprep.mubr.f32.mxu0 0.0
      %306 = vmatmul.mubr.f32.gmra.mrb[0].mxu0 %v224
      %v307 = vpop.f32.mrb[0].mxu0
      %v308 = vadd.f32 %v211, %v307
      %v309 = vpop.f32.mrb[0].mxu0
      %310 = vdwg.mxu0
      %v311 = vtanh.pop %v293
      %v312 = vtanh.pop %v298
      %v313 = vtanh.pop %v303
      %v314 = vtanh.pop %v308
      %v315 = vld [vmem:[%s3] sm:$0x1]
      %v317 = vlaneseq
      %v318 = vshrl.u32 %v317, 7
      %v319 = vsub.s32 0, %v318
      %v320 = vrot.slane %v315, %v319
      %v322 = vmul.f32 %v311, %v320
      %v323 = vmul.f32 %v312, %v320
      %v324 = vmul.f32 %v313, %v320
      %v325 = vmul.f32 %v314, %v320
      %v326 = vsel %vm213, %v322, 0.0
      %327 = vadd.xlane.f32.xlu0 %v326
      %v328 = vpop.xlane.xlu0 %327
      %v329 = vsel %vm213, %v323, 0.0
      %330 = vadd.xlane.f32.xlu0 %v329
      %v331 = vpop.xlane.xlu0 %330
      %v332 = vsel %vm213, %v324, 0.0
      %333 = vadd.xlane.f32.xlu0 %v332
      %v334 = vpop.xlane.xlu0 %333
      %v335 = vsel %vm213, %v325, 0.0
      %336 = vadd.xlane.f32.xlu0 %v335
      %v337 = vpop.xlane.xlu0 %336
      %v338 = vlaneseq
      %v339 = vshrl.u32 %v338, 7
      %v340 = vadd.s32 %v339, 8
      %v341 = vadd.s32 %v339, 16
      %v342 = vadd.s32 %v339, 24
      %vm343 = vcmp.lt.s32.totalorder %v339, 0
      %v344 = vsub.s32 0, %v339
      %v345 = vsel %vm343, %v344, %v339
      %v346 = vshrl.u32 %v345, 2
      %v347 = vand.u32 %v345, 3
      %v348 = vsub.s32 0, %v347
      %v349 = vsel %vm343, %v348, %v347
      %vm350 = vcmp.lt.s32.totalorder %v340, 0
      %v351 = vsub.s32 0, %v340
      %v352 = vsel %vm350, %v351, %v340
      %v353 = vshrl.u32 %v352, 2
      %v354 = vand.u32 %v352, 3
      %v355 = vsub.s32 0, %v354
      %v356 = vsel %vm350, %v355, %v354
      %vm357 = vcmp.lt.s32.totalorder %v341, 0
      %v358 = vsub.s32 0, %v341
      %v359 = vsel %vm357, %v358, %v341
      %v360 = vshrl.u32 %v359, 2
      %v361 = vand.u32 %v359, 3
      %v362 = vsub.s32 0, %v361
      %v363 = vsel %vm357, %v362, %v361
      %vm364 = vcmp.lt.s32.totalorder %v342, 0
      %v365 = vsub.s32 0, %v342
      %v366 = vsel %vm364, %v365, %v342
      %v367 = vshrl.u32 %v366, 2
      %v368 = vand.u32 %v366, 3
      %v369 = vsub.s32 0, %v368
      %v370 = vsel %vm364, %v369, %v368
      %vm371 = vcmp.ne.s32.totalorder %v349, 0
      %vm372 = vcmp.ne.s32.totalorder %v356, 0
      %vm373 = vcmp.ne.s32.totalorder %v363, 0
      %vm374 = vcmp.ne.s32.totalorder %v370, 0
      %vm375 = vcmp.lt.s32.totalorder %v349, 0
      %vm376 = vcmp.lt.s32.totalorder %v356, 0
      %vm377 = vcmp.lt.s32.totalorder %v363, 0
      %vm378 = vcmp.lt.s32.totalorder %v370, 0
      %vm379 = vmand %vm375, %vm371
      %vm380 = vmand %vm376, %vm372
      %vm381 = vmand %vm377, %vm373
      %vm382 = vmand %vm378, %vm374
      %v383 = vadd.s32 %v349, 4
      %v384 = vadd.s32 %v356, 4
      %v385 = vadd.s32 %v363, 4
      %v386 = vadd.s32 %v370, 4
      %v387 = vsel %vm379, %v383, %v349
      %v388 = vsel %vm380, %v384, %v356
      %v389 = vsel %vm381, %v385, %v363
      %v390 = vsel %vm382, %v386, %v370
      %v391 = vlaneseq
      %v392 = vand.u32 %v391, 127
      %vm393 = vcmp.eq.s32.totalorder %v387, %v392
      %vm394 = vcmp.eq.s32.totalorder %v388, %v392
      %vm395 = vcmp.eq.s32.totalorder %v389, %v392
      %vm396 = vcmp.eq.s32.totalorder %v390, %v392
      %v397 = vsel %vm393, %v328, 0.0
      %v398 = vsel %vm394, %v331, 0.0
      %v399 = vsel %vm395, %v334, 0.0
      %v400 = vsel %vm396, %v337, 0.0
      %vm401 = vcmask 31744
      %v402 = vsel %vm401, %v397, 0.0
      %v403 = vsel %vm401, %v398, 0.0
      %v404 = vadd.f32 %v402, %v403
      %v405 = vsel %vm401, %v399, 0.0
      %v406 = vadd.f32 %v404, %v405
      %v407 = vsel %vm401, %v400, 0.0
      %v408 = vadd.f32 %v406, %v407
      %v409 = vrot.slane %v408, 4
      %v410 = vadd.f32 %v408, %v409
      %v411 = vrot.slane %v410, 2
      %v412 = vadd.f32 %v410, %v411
      %v413 = vrot.slane %v412, 1
      %v414 = vadd.f32 %v412, %v413
      %415 = vst.msk [vmem:[%s197] sm:$0xff] %vm401, %v414
      %p416 = scmp.lt.s32.totalorder %s15, 1
      %s417 = scalar_select %p416, %s15, 1
      %s418 = smul.addr %s417, 8
      %s419 = scalar_lea.vmem %s4, %s418
      // Predicated region
      $region37: #{tpu_custom_call.1} parent=35 // pred_check
        %p420 = pneg %p122
      $region38: #{tpu_custom_call.1} parent=35 // pred_check_branch
        %422 = sbr.rel (%p420) target = $region40
      $region39: #{tpu_custom_call.1} parent=35 // pred_region
        _
      $region40: #{tpu_custom_call.1} parent=35 // pred_fallthru
        _
    $region36: #{tpu_custom_call.1} parent=5 // pred_fallthru
      _
    %p423 = scmp.le.s32.totalorder 2, %s10
    // Predicated region
    $region41: #{tpu_custom_call.1} parent=5 // pred_check
      %p424 = pneg %p423
    $region42: #{tpu_custom_call.1} parent=5 // pred_check_branch
      %426 = sbr.rel (%p424) target = $region44
    $region43: #{tpu_custom_call.1} parent=5 // pred_region
      %s427 = ssub.s32 %s10, 2
      // Predicated region
      $region45: #{tpu_custom_call.1} parent=43 // pred_check
        %p428 = pneg %p128
      $region46: #{tpu_custom_call.1} parent=43 // pred_check_branch
        %430 = sbr.rel (%p428) target = $region48
      $region47: #{tpu_custom_call.1} parent=43 // pred_region
        %p431 = scmp.lt.s32.totalorder %s16, 1
        %s432 = scalar_select %p431, %s16, 1
        %s433 = smul.addr %s432, 8
        %s434 = scalar_lea.vmem %s4, %s433
      $region48: #{tpu_custom_call.1} parent=43 // pred_fallthru
        _
    $region44: #{tpu_custom_call.1} parent=5 // pred_fallthru
      _
  $region6: #{tpu_custom_call.1} parent=0 // loop_footer
    %s14 = sadd.s32 1, %s10
  $region7: #{tpu_custom_call.1} parent=0 // loop_footer_branch
    %9 = sbr.rel target = $region3
  $region8: #{tpu_custom_call.1} parent=0 // loop_exit
    _

</llo_original>
